<compile_context>
chip_gen: v7x
topology: tpu7x:2x2x1
jax: 0.10.0
libtpu: 0.0.40
codegen_flags: <defaults>
</compile_context>

<pallas_src>
import math

import jax
import jax.numpy as jnp
from jax.experimental import pallas as pl
from jax.experimental.pallas import tpu as pltpu


def _lane_dense_2d(total):
    """Pick a lane-dense (rows, cols) factorization of a contiguous buffer."""
    for lanes in (1024, 512, 256, 128):
        if total % lanes == 0:
            return total // lanes, lanes
    return 1, total


def identity(x):
    """Pallas implementation of Identity.forward: returns x unchanged."""
    orig_shape = x.shape
    orig_dtype = x.dtype

    total = math.prod(orig_shape) if x.ndim > 0 else 1
    if total == 0:
        return x  # nothing to copy

    # Free reshape to a lane-dense 2D slab (array is contiguous).
    rows, lanes = _lane_dense_2d(total)
    x2 = x.reshape(rows, lanes)

    # Chunk the rows into a few large (>= 1 MiB) equal DMA chunks so the grid
    # can shard across TensorCores (v7x megacore); otherwise do one whole-array
    # DMA. HBM->HBM DMA has no VMEM footprint, so chunks can be large.
    itemsize = x.dtype.itemsize
    min_chunk_bytes = 1 << 20
    num_chunks = 1
    for c in (8, 4, 2):
        if rows % c == 0 and (rows // c) * lanes * itemsize >= min_chunk_bytes:
            num_chunks = c
            break
    chunk_rows = rows // num_chunks

    def _identity_dma_kernel(x_hbm, o_hbm, sem):
        # Direct HBM -> HBM copy of this grid step's row chunk.
        i = pl.program_id(0)
        start = i * chunk_rows
        cp = pltpu.make_async_copy(
            x_hbm.at[pl.ds(start, chunk_rows)],
            o_hbm.at[pl.ds(start, chunk_rows)],
            sem,
        )
        cp.start()
        cp.wait()

    out2 = pl.pallas_call(
        _identity_dma_kernel,
        out_shape=jax.ShapeDtypeStruct((rows, lanes), orig_dtype),
        grid=(num_chunks,),
        in_specs=[pl.BlockSpec(memory_space=pl.ANY)],
        out_specs=pl.BlockSpec(memory_space=pl.ANY),
        scratch_shapes=[pltpu.SemaphoreType.DMA],
        compiler_params=pltpu.CompilerParams(
            dimension_semantics=("parallel",),
        ),
    )(x2)

    return out2.reshape(orig_shape)


if __name__ == "__main__":
    key = jax.random.PRNGKey(0)
    # Small NCHW-style input consistent with typical conv-module usage.
    x = jax.random.normal(key, (2, 4, 16, 16), dtype=jnp.float32)

    y = identity(x)
    y = jax.block_until_ready(y)

    assert y.shape == x.shape and y.dtype == x.dtype
    assert bool(jnp.all(y == x))
    print("KERNEL_OK")
</pallas_src>

<mosaic_0001>
module attributes {stable_mosaic.version = 11 : i64} {
  func.func @_identity_dma_kernel(%arg0: i32, %arg1: memref<2x1024xf32, #tpu.memory_space<any>>, %arg2: memref<2x1024xf32, #tpu.memory_space<any>>, %arg3: memref<!tpu.dma_semaphore, #tpu.memory_space<semaphore_mem>>) attributes {dimension_semantics = [#tpu.dimension_semantics<parallel>], iteration_bounds = array<i64: 1>, scalar_prefetch = 0 : i64, scratch_operands = 1 : i64, tpu.core_type = #tpu.core_type<tc>, window_params = [{}, {}]} {
    %c2_i32 = arith.constant 2 : i32
    %0 = arith.muli %arg0, %c2_i32 : i32
    %c0_i32 = arith.constant 0 : i32
    %1 = tpu.memref_slice %arg1[%0, %c0_i32] : memref<2x1024xf32, #tpu.memory_space<any>> -> memref<2x1024xf32, #tpu.memory_space<any>>
    %c0_i32_0 = arith.constant 0 : i32
    %2 = tpu.memref_slice %arg2[%0, %c0_i32_0] : memref<2x1024xf32, #tpu.memory_space<any>> -> memref<2x1024xf32, #tpu.memory_space<any>>
    tpu.enqueue_dma source(%1 : memref<2x1024xf32, #tpu.memory_space<any>>) target(%2 : memref<2x1024xf32, #tpu.memory_space<any>>) target_semaphore(%arg3 : memref<!tpu.dma_semaphore, #tpu.memory_space<semaphore_mem>>)
    %c0_i32_1 = arith.constant 0 : i32
    %3 = tpu.memref_slice %arg1[%0, %c0_i32_1] : memref<2x1024xf32, #tpu.memory_space<any>> -> memref<2x1024xf32, #tpu.memory_space<any>>
    %c0_i32_2 = arith.constant 0 : i32
    %4 = tpu.memref_slice %arg2[%0, %c0_i32_2] : memref<2x1024xf32, #tpu.memory_space<any>> -> memref<2x1024xf32, #tpu.memory_space<any>>
    tpu.wait_dma2 semaphore(%arg3 : memref<!tpu.dma_semaphore, #tpu.memory_space<semaphore_mem>>) src(%3 : memref<2x1024xf32, #tpu.memory_space<any>>) dst(%4 : memref<2x1024xf32, #tpu.memory_space<any>>)
    return
  }
}

</mosaic_0001>

<llo_original>
// kernel: tpu_custom_call.1
$region0: #{tpu_custom_call.1}
  #allocation0 [shape = 'u32[]', space=smem, size = 0x4, offset = 0x4, fixed_abs, tag = 'smem constant byte address 0x4 - core index']
  #allocation1 [shape = 'u32[144,128]{1,0:T(1,128)}', space=vmem, size = 0x12000, scoped, tag = 'internal scratch']
  #allocation2 [shape = 's32[1]{0}', space=sflag, size = 0x4, scoped, tag = 'scratch operand']
  #allocation3 [shape = 's32[]', space=sflag, size = 0x4, offset = 0, fixed_abs, tag = 'sflag constant byte address 0x0 - dummy sync flag']
  #allocation4 [shape = 'u32[0]{0}', space=smem, size = 0, offset = 0, fixed_abs, tag = 'smem constant byte address 0x0 - null']
  %s0 = inlined_call_operand.hbm [shape: f32[2,1024], index: 0, kind: input, shape index: {}]
  %s1 = inlined_call_operand.hbm [shape: f32[2,1024], index: 1, kind: output, shape index: {}]
  %s2 = sld [smem:[#allocation0]]
  $region2: #{tpu_custom_call.1} parent=0
    _
  %s4 = ssub.s32 1, %s2
  %s5 = scalar_select 0, %s4, %s2
  %s6 = smul.u32 0, 2
  %s7 = sshra.s32 %s6, 1
  %s8 = sand.u32 %s6, 1
  %s9 = smul.u32 %s7, 8
  %s10 = smul.addr %s9, 32
  %s11 = scalar_lea.hbm %s0, %s10
  %s12 = smul.addr %s9, 32
  %s13 = scalar_lea.hbm %s1, %s12
  %s15 = sshll.u32 1, 14
  %s16 = sxor.u32 4294967295, %s15
  %s19 = sshll.u32 3, 24
  %s20 = sxor.u32 4294967295, %s19
  %s21 = sand.u32 0, %s20
  %s23 = sor.u32 %s21, 0
  %26 = dma.general %s11, 256, %s13, [#allocation2], [#allocation3], [#allocation4], %s23, 0
  %s27 = smul.u32 2, 1
  %s28 = smul.u32 %s27, 8
  %s29 = sshll.u32 %s28, 4
  %30 = dma.done [#allocation2], %s29
  %31 = vsyncmov [#allocation2]
  %s32 = vpop.sfrf %31
  %p33 = scmp.eq.s32.totalorder %s32, 0
  %p34 = pneg %p33
  %36 = shalt.err (%p34)

</llo_original>
